<compile_context>
chip_gen: v5e
topology: v5e:2x2
jax: 0.10.0
libtpu: 0.0.40
codegen_flags: <defaults>
</compile_context>

<pallas_src>
import functools

import numpy as np
import jax
import jax.numpy as jnp
from jax.experimental import pallas as pl
from jax.experimental.pallas import tpu as pltpu

NBODY = 5
NMID = 10

REPL = 64                  # original rows folded into one lane-dense fat row
KIN = NBODY * REPL         # 320
KOUT = NMID * REPL         # 640  (5 x 128 -> unmasked, full-lane stores)

MAX_TB = 512               # fat rows per grid step (no HBM-roofline gain past this)
MIN_STEPS = 8              # pipeline depth target; >= ~4 steps per TC on 2-TC chips


def _adjacency() -> np.ndarray:
    """The 0/1 part of the module's fixed (5, 10) buffer."""
    left_leg, right_leg, spine = [0, 1, 4], [2, 3, 4], [4, 5]
    left_arm, right_arm = [6, 7, 4], [8, 9, 4]
    a = np.zeros((NBODY, NMID), dtype=np.float32)
    a[0, left_leg] = 1.0
    a[1, right_leg] = 1.0
    a[2, spine] = 1.0
    a[3, left_arm] = 1.0
    a[4, right_arm] = 1.0
    return a


def _make_weight() -> np.ndarray:
    """The module's fixed (5, 10) buffer, identical to the PyTorch __init__."""
    a = _adjacency()
    return a / np.sum(a, axis=0, keepdims=True)


@functools.lru_cache(maxsize=None)
def _kernel_constants():
    """Built once: bf16 block-diagonal 0/1 adjacency + f32 inverse-scale row."""
    adj = _adjacency()
    inv_scale = 1.0 / np.sum(adj, axis=0, keepdims=True)           # (1, 10)
    a_bd = np.kron(np.eye(REPL, dtype=np.float32), adj)             # (320, 640), 0/1
    inv_row = np.tile(inv_scale, (1, REPL))                         # (1, 640)
    return (jnp.asarray(a_bd, dtype=jnp.bfloat16),                  # exact in bf16
            jnp.asarray(inv_row, dtype=jnp.float32))


def _unpool_kernel(x_ref, a_ref, s_ref, o_ref):
    # x_ref: (tb, 320) f32 fat tile, a_ref: (320, 640) bf16 0/1 block-diagonal,
    # s_ref: (1, 640) f32 per-lane 1/scale, o_ref: (tb, 640) f32 fat out tile.
    x = x_ref[...]
    x_hi = x.astype(jnp.bfloat16)                                   # VPU cast
    x_lo = (x - x_hi.astype(jnp.float32)).astype(jnp.bfloat16)      # residual
    a = a_ref[...]
    acc = jnp.dot(x_hi, a, preferred_element_type=jnp.float32)      # MXU pass 1
    acc = acc + jnp.dot(x_lo, a, preferred_element_type=jnp.float32)  # MXU pass 2
    o_ref[...] = (acc * s_ref[...]).astype(o_ref.dtype)             # VPU scale


def _fat_tile_rows(mb: int) -> int:
    if mb <= 8:
        return mb                       # single block == full (tiny) array
    tb = pl.cdiv(mb, MIN_STEPS)         # aim for >= MIN_STEPS grid steps
    tb = min(MAX_TB, max(8, tb))
    return pl.cdiv(tb, 8) * 8           # sublane multiple of 8


@jax.jit
def unpool_bodypart_to_mid(x: jnp.ndarray) -> jnp.ndarray:
    """x: (N, C, T, 5) -> (N, C, T, 10), matching torch.einsum('nctv,vw->nctw')."""
    n, c, t, v = x.shape
    assert v == NBODY
    m = n * c * t

    a_bd, inv_row = _kernel_constants()

    # ---- fat-row view: 64 original rows -> one lane-dense row of width 320 ----
    rem = m % REPL
    if rem == 0:
        mb = m // REPL
        x_fat = x.reshape(mb, KIN)                 # contiguous -> pure bitcast
    else:
        # Rare ragged case: pad only up to the next multiple of REPL.
        mb = m // REPL + 1
        x2d = x.reshape(m, NBODY)
        x2d = jnp.pad(x2d, ((0, REPL - rem), (0, 0)))
        x_fat = x2d.reshape(mb, KIN)

    tb = _fat_tile_rows(mb)
    steps = pl.cdiv(mb, tb)
    # Ragged last block is safe: each 640-wide output lane group depends only
    # on its own 320-wide input lane group (no cross-row reduction), and Pallas
    # discards out-of-bounds output rows.  Preserve this invariant.

    out_fat = pl.pallas_call(
        _unpool_kernel,
        out_shape=jax.ShapeDtypeStruct((mb, KOUT), x.dtype),
        grid_spec=pltpu.PrefetchScalarGridSpec(
            num_scalar_prefetch=0,
            grid=(steps,),
            in_specs=[
                pl.BlockSpec((tb, KIN), lambda i: (i, 0)),       # fat x tile
                pl.BlockSpec((KIN, KOUT), lambda i: (0, 0)),     # resident weight
                pl.BlockSpec((1, KOUT), lambda i: (0, 0)),       # resident 1/scale
            ],
            out_specs=pl.BlockSpec((tb, KOUT), lambda i: (i, 0)),
        ),
        compiler_params=pltpu.CompilerParams(
            dimension_semantics=("parallel",),   # sharded across v7x's 2 TCs
        ),
    )(x_fat, a_bd, inv_row)

    if rem == 0:
        return out_fat.reshape(n, c, t, NMID)      # pure bitcast, no copy
    out2d = out_fat.reshape(mb * REPL, NMID)[:m]
    return out2d.reshape(n, c, t, NMID)


if __name__ == "__main__":
    key = jax.random.PRNGKey(0)
    # Small shapes consistent with the module: V (joints) must be 5.
    n, c, t = 2, 4, 16
    x = jax.random.normal(key, (n, c, t, NBODY), dtype=jnp.float32)

    out = unpool_bodypart_to_mid(x)
    out = jax.block_until_ready(out)

    # Reference: true f32 einsum (precision pinned), same semantics as torch.
    w = jnp.asarray(_make_weight())
    ref = jnp.einsum("nctv,vw->nctw", x, w, precision=jax.lax.Precision.HIGHEST)
    assert out.shape == (n, c, t, NMID)
    np.testing.assert_allclose(np.asarray(out), np.asarray(ref), rtol=2e-4, atol=2e-4)

    print("KERNEL_OK")
</pallas_src>

<mosaic_0001>
module attributes {stable_mosaic.version = 11 : i64} {
  func.func @_unpool_kernel(%arg0: i32, %arg1: memref<2x320xf32, #tpu.memory_space<vmem>>, %arg2: memref<320x640xbf16, #tpu.memory_space<vmem>>, %arg3: memref<1x640xf32, #tpu.memory_space<vmem>>, %arg4: memref<2x640xf32, #tpu.memory_space<vmem>>) attributes {dimension_semantics = [#tpu.dimension_semantics<parallel>], iteration_bounds = array<i64: 1>, scalar_prefetch = 0 : i64, scratch_operands = 0 : i64, tpu.core_type = #tpu.core_type<tc>, window_params = [{transform_indices = @transform_0, window_bounds = array<i64: 2, 320>}, {pipeline_mode = #tpu.pipeline_mode<synchronous>, transform_indices = @transform_1, window_bounds = array<i64: 320, 640>}, {pipeline_mode = #tpu.pipeline_mode<synchronous>, transform_indices = @transform_2, window_bounds = array<i64: 1, 640>}, {transform_indices = @transform_3, window_bounds = array<i64: 2, 640>}]} {
    %c0 = arith.constant 0 : index
    %c0_0 = arith.constant 0 : index
    %0 = vector.load %arg1[%c0, %c0_0] : memref<2x320xf32, #tpu.memory_space<vmem>>, vector<2x320xf32>
    %1 = arith.truncf %0 : vector<2x320xf32> to vector<2x320xbf16>
    %2 = arith.extf %1 : vector<2x320xbf16> to vector<2x320xf32>
    %3 = arith.subf %0, %2 : vector<2x320xf32>
    %4 = arith.truncf %3 : vector<2x320xf32> to vector<2x320xbf16>
    %c0_1 = arith.constant 0 : index
    %c0_2 = arith.constant 0 : index
    %5 = vector.load %arg2[%c0_1, %c0_2] : memref<320x640xbf16, #tpu.memory_space<vmem>>, vector<320x640xbf16>
    %cst = arith.constant dense<0.000000e+00> : vector<2x640xf32>
    %6 = tpu.matmul %1, %5, %cst {dimension_numbers = #tpu.dot_dimension_numbers<[1], [0], [0], [1], [0, 0, 1, 1], [], []>} : vector<2x320xbf16>, vector<320x640xbf16>, vector<2x640xf32> -> vector<2x640xf32>
    %cst_3 = arith.constant dense<0.000000e+00> : vector<2x640xf32>
    %7 = tpu.matmul %4, %5, %cst_3 {dimension_numbers = #tpu.dot_dimension_numbers<[1], [0], [0], [1], [0, 0, 1, 1], [], []>} : vector<2x320xbf16>, vector<320x640xbf16>, vector<2x640xf32> -> vector<2x640xf32>
    %8 = arith.addf %6, %7 : vector<2x640xf32>
    %c0_4 = arith.constant 0 : index
    %c0_5 = arith.constant 0 : index
    %9 = vector.load %arg3[%c0_4, %c0_5] : memref<1x640xf32, #tpu.memory_space<vmem>>, vector<1x640xf32>
    %10 = vector.broadcast %9 : vector<1x640xf32> to vector<2x640xf32>
    %11 = arith.mulf %8, %10 : vector<2x640xf32>
    %c0_6 = arith.constant 0 : index
    %c0_7 = arith.constant 0 : index
    %12 = vector.load %arg4[%c0_6, %c0_7] : memref<2x640xf32, #tpu.memory_space<vmem>>, vector<2x640xf32>
    tpu.vector_store %arg4[%c0_6, %c0_7], %11 {strides = array<i32>} : memref<2x640xf32, #tpu.memory_space<vmem>>, vector<2x640xf32>,
    return
  }
  func.func @transform_0(%arg0: i32) -> (i32, i32) {
    %c0_i32 = arith.constant 0 : i32
    %c0_i32_0 = arith.constant 0 : i32
    return %arg0, %c0_i32 : i32, i32
  }
  func.func @transform_1(%arg0: i32) -> (i32, i32) {
    %c0_i32 = arith.constant 0 : i32
    %c0_i32_0 = arith.constant 0 : i32
    %c0_i32_1 = arith.constant 0 : i32
    return %c0_i32, %c0_i32_0 : i32, i32
  }
  func.func @transform_2(%arg0: i32) -> (i32, i32) {
    %c0_i32 = arith.constant 0 : i32
    %c0_i32_0 = arith.constant 0 : i32
    %c0_i32_1 = arith.constant 0 : i32
    return %c0_i32, %c0_i32_0 : i32, i32
  }
  func.func @transform_3(%arg0: i32) -> (i32, i32) {
    %c0_i32 = arith.constant 0 : i32
    %c0_i32_0 = arith.constant 0 : i32
    return %arg0, %c0_i32 : i32, i32
  }
}

</mosaic_0001>

<llo_original>
// kernel: unpool_bodypart_to_mid.1
$region0: #{unpool_bodypart_to_mid.1}
  #allocation0 [shape = 'u32[]', space=smem, size = 0x4, offset = 0x4, fixed_abs, tag = 'smem constant byte address 0x4 - core index']
  #allocation1 [shape = 'u32[72,128]{1,0:T(1,128)}', space=vmem, size = 0x9000, scoped, tag = 'internal scratch']
  %s0 = inlined_call_operand.vmem [shape: f32[2,320], index: 0, kind: input, shape index: {}]
  %s1 = inlined_call_operand.hbm [shape: bf16[320,640], index: 1, kind: input, shape index: {}]
  %s2 = inlined_call_operand.vmem [shape: f32[1,640], index: 2, kind: input, shape index: {}]
  %s3 = inlined_call_operand.vmem [shape: f32[2,640], index: 3, kind: output, shape index: {}]
  %s4 = sld [smem:[#allocation0]]
  $region26: #{unpool_bodypart_to_mid.1} parent=0
    _
  %s6 = ssub.s32 1, %s4
  %s7 = scalar_select 0, %s6, %s4
  $region1: #{unpool_bodypart_to_mid.1} parent=0
    #allocation2 [shape = 'u8[409600]{0}', space=vmem, size = 0x64000, scoped, tag = 'input window, operand 1, single buffered']
    #allocation3 [shape = 's32[1]{0}', space=sflag, size = 0x4, scoped, tag = 'scoped memory for unpool_bodypart_to_mid.1']
    %8 = vsyncpa [#allocation3], 0
    // Predicated region
    $region2: #{unpool_bodypart_to_mid.1} parent=1 // pred_check
      _
    $region3: #{unpool_bodypart_to_mid.1} parent=1 // pred_check_branch
      %10 = sbr.rel (0) target = $region5
    $region4: #{unpool_bodypart_to_mid.1} parent=1 // pred_region
      _
    $region5: #{unpool_bodypart_to_mid.1} parent=1 // pred_fallthru
      _
    // Predicated region
    $region6: #{unpool_bodypart_to_mid.1} parent=1 // pred_check
      _
    $region7: #{unpool_bodypart_to_mid.1} parent=1 // pred_check_branch
      %12 = sbr.rel (0) target = $region9
    $region8: #{unpool_bodypart_to_mid.1} parent=1 // pred_region
      %14 = vsyncadd [#allocation3], 0
      %s15 = sshll.u32 %s1, 4
      %s16 = int_to_ptr.hbm [resolvable:$true] %s15
      %s17 = sshll.u32 [#allocation2], 4
      %s18 = int_to_ptr.vmem [resolvable:$true] %s17
      %23 = dma.hbm_to_vmem [thread:$0]  %s16, 12800, %s18, [#allocation3], 320, 320, 20
    $region9: #{unpool_bodypart_to_mid.1} parent=1 // pred_fallthru
      _
    // Predicated region
    $region10: #{unpool_bodypart_to_mid.1} parent=1 // pred_check
      _
    $region11: #{unpool_bodypart_to_mid.1} parent=1 // pred_check_branch
      %25 = sbr.rel (0) target = $region13
    $region12: #{unpool_bodypart_to_mid.1} parent=1 // pred_region
      _
    $region13: #{unpool_bodypart_to_mid.1} parent=1 // pred_fallthru
      _
    // Predicated region
    $region14: #{unpool_bodypart_to_mid.1} parent=1 // pred_check
      _
    $region15: #{unpool_bodypart_to_mid.1} parent=1 // pred_check_branch
      %27 = sbr.rel (0) target = $region17
    $region16: #{unpool_bodypart_to_mid.1} parent=1 // pred_region
      %29 = dma.done [#allocation3], 12800
    $region17: #{unpool_bodypart_to_mid.1} parent=1 // pred_fallthru
      _
    %v31 = vld [vmem:[%s0] sm:$0x3f]
    %33 = vst [vmem:[#allocation1] ss:$4 sm:$0xff] %v31
    %v34 = vld.sshfl [vmem:[#allocation1] sm:$0xff pattern:$0x73625140]
    %v35 = vld.sshfl [vmem:[#allocation1 + $0x8] sm:$0xff pattern:$0x73625140]
    %v36 = vld.sshfl [vmem:[#allocation1 + $0x10] sm:$0xff pattern:$0x73625140]
    %v40 = vpack.c.bf16 %v35, %v34
    %v41 = vpack.c.bf16 %v36, %v36
    %v42 = vunpack.c.l.bf16 %v40
    %v43 = vunpack.c.h.bf16 %v40
    %v44 = vunpack.c.l.bf16 %v41
    %v48 = vrot.slane %v43, 6
    %v49 = vrot.slane %v44, 4
    %vm50 = vcmask 1041408
    %v51 = vsel %vm50, %v42, %v48
    %vm52 = vcmask 1043456
    %v53 = vsel %vm52, %v51, %v49
    %v55 = vsub.f32 %v31, %v53
    %57 = vst [vmem:[#allocation1] ss:$4 sm:$0xff] %v55
    %v58 = vld.sshfl [vmem:[#allocation1] sm:$0xff pattern:$0x73625140]
    %v59 = vld.sshfl [vmem:[#allocation1 + $0x8] sm:$0xff pattern:$0x73625140]
    %v60 = vld.sshfl [vmem:[#allocation1 + $0x10] sm:$0xff pattern:$0x73625140]
    %v64 = vpack.c.bf16 %v58, %v58
    %v65 = vpack.c.bf16 %v59, %v59
    %v66 = vpack.c.bf16 %v60, %v60
    %v67 = vld [vmem:[#allocation2] sm:$0xff]
    %v68 = vld [vmem:[#allocation2 + $0x8] sm:$0xff]
    %v69 = vld [vmem:[#allocation2 + $0x10] sm:$0xf]
    %v70 = vld [vmem:[#allocation2 + $0x14] sm:$0xff]
    %v71 = vld [vmem:[#allocation2 + $0x1c] sm:$0xff]
    %v72 = vld [vmem:[#allocation2 + $0x24] sm:$0xf]
    %v73 = vld [vmem:[#allocation2 + $0x28] sm:$0xff]
    %v74 = vld [vmem:[#allocation2 + $0x30] sm:$0xff]
    %v75 = vld [vmem:[#allocation2 + $0x38] sm:$0xf]
    %v76 = vld [vmem:[#allocation2 + $0x3c] sm:$0xff]
    %v77 = vld [vmem:[#allocation2 + $0x44] sm:$0xff]
    %v78 = vld [vmem:[#allocation2 + $0x4c] sm:$0xf]
    %v79 = vld [vmem:[#allocation2 + $0x50] sm:$0xff]
    %v80 = vld [vmem:[#allocation2 + $0x58] sm:$0xff]
    %v81 = vld [vmem:[#allocation2 + $0x60] sm:$0xf]
    %v82 = vld [vmem:[#allocation2 + $0x64] sm:$0xff]
    %v83 = vld [vmem:[#allocation2 + $0x6c] sm:$0xff]
    %v84 = vld [vmem:[#allocation2 + $0x74] sm:$0xf]
    %v85 = vld [vmem:[#allocation2 + $0x78] sm:$0xff]
    %v86 = vld [vmem:[#allocation2 + $0x80] sm:$0xff]
    %v87 = vld [vmem:[#allocation2 + $0x88] sm:$0xf]
    %v88 = vld [vmem:[#allocation2 + $0x8c] sm:$0xff]
    %v89 = vld [vmem:[#allocation2 + $0x94] sm:$0xff]
    %v90 = vld [vmem:[#allocation2 + $0x9c] sm:$0xf]
    %v91 = vld [vmem:[#allocation2 + $0xa0] sm:$0xff]
    %v92 = vld [vmem:[#allocation2 + $0xa8] sm:$0xff]
    %v93 = vld [vmem:[#allocation2 + $0xb0] sm:$0xf]
    %v94 = vld [vmem:[#allocation2 + $0xb4] sm:$0xff]
    %v95 = vld [vmem:[#allocation2 + $0xbc] sm:$0xff]
    %v96 = vld [vmem:[#allocation2 + $0xc4] sm:$0xf]
    %v97 = vld [vmem:[#allocation2 + $0xc8] sm:$0xff]
    %v98 = vld [vmem:[#allocation2 + $0xd0] sm:$0xff]
    %v99 = vld [vmem:[#allocation2 + $0xd8] sm:$0xf]
    %v100 = vld [vmem:[#allocation2 + $0xdc] sm:$0xff]
    %v101 = vld [vmem:[#allocation2 + $0xe4] sm:$0xff]
    %v102 = vld [vmem:[#allocation2 + $0xec] sm:$0xf]
    %v103 = vld [vmem:[#allocation2 + $0xf0] sm:$0xff]
    %v104 = vld [vmem:[#allocation2 + $0xf8] sm:$0xff]
    %v105 = vld [vmem:[#allocation2 + $0x100] sm:$0xf]
    %v106 = vld [vmem:[#allocation2 + $0x104] sm:$0xff]
    %v107 = vld [vmem:[#allocation2 + $0x10c] sm:$0xff]
    %v108 = vld [vmem:[#allocation2 + $0x114] sm:$0xf]
    %v109 = vld [vmem:[#allocation2 + $0x118] sm:$0xff]
    %v110 = vld [vmem:[#allocation2 + $0x120] sm:$0xff]
    %v111 = vld [vmem:[#allocation2 + $0x128] sm:$0xf]
    %v112 = vld [vmem:[#allocation2 + $0x12c] sm:$0xff]
    %v113 = vld [vmem:[#allocation2 + $0x134] sm:$0xff]
    %v114 = vld [vmem:[#allocation2 + $0x13c] sm:$0xf]
    %v115 = vld [vmem:[#allocation2 + $0x140] sm:$0xff]
    %v116 = vld [vmem:[#allocation2 + $0x148] sm:$0xff]
    %v117 = vld [vmem:[#allocation2 + $0x150] sm:$0xf]
    %v118 = vld [vmem:[#allocation2 + $0x154] sm:$0xff]
    %v119 = vld [vmem:[#allocation2 + $0x15c] sm:$0xff]
    %v120 = vld [vmem:[#allocation2 + $0x164] sm:$0xf]
    %v121 = vld [vmem:[#allocation2 + $0x168] sm:$0xff]
    %v122 = vld [vmem:[#allocation2 + $0x170] sm:$0xff]
    %v123 = vld [vmem:[#allocation2 + $0x178] sm:$0xf]
    %v124 = vld [vmem:[#allocation2 + $0x17c] sm:$0xff]
    %v125 = vld [vmem:[#allocation2 + $0x184] sm:$0xff]
    %v126 = vld [vmem:[#allocation2 + $0x18c] sm:$0xf]
    %v127 = vld [vmem:[#allocation2 + $0x190] sm:$0xff]
    %v128 = vld [vmem:[#allocation2 + $0x198] sm:$0xff]
    %v129 = vld [vmem:[#allocation2 + $0x1a0] sm:$0xf]
    %v130 = vld [vmem:[#allocation2 + $0x1a4] sm:$0xff]
    %v131 = vld [vmem:[#allocation2 + $0x1ac] sm:$0xff]
    %v132 = vld [vmem:[#allocation2 + $0x1b4] sm:$0xf]
    %v133 = vld [vmem:[#allocation2 + $0x1b8] sm:$0xff]
    %v134 = vld [vmem:[#allocation2 + $0x1c0] sm:$0xff]
    %v135 = vld [vmem:[#allocation2 + $0x1c8] sm:$0xf]
    %v136 = vld [vmem:[#allocation2 + $0x1cc] sm:$0xff]
    %v137 = vld [vmem:[#allocation2 + $0x1d4] sm:$0xff]
    %v138 = vld [vmem:[#allocation2 + $0x1dc] sm:$0xf]
    %v139 = vld [vmem:[#allocation2 + $0x1e0] sm:$0xff]
    %v140 = vld [vmem:[#allocation2 + $0x1e8] sm:$0xff]
    %v141 = vld [vmem:[#allocation2 + $0x1f0] sm:$0xf]
    %v142 = vld [vmem:[#allocation2 + $0x1f4] sm:$0xff]
    %v143 = vld [vmem:[#allocation2 + $0x1fc] sm:$0xff]
    %v144 = vld [vmem:[#allocation2 + $0x204] sm:$0xf]
    %v145 = vld [vmem:[#allocation2 + $0x208] sm:$0xff]
    %v146 = vld [vmem:[#allocation2 + $0x210] sm:$0xff]
    %v147 = vld [vmem:[#allocation2 + $0x218] sm:$0xf]
    %v148 = vld [vmem:[#allocation2 + $0x21c] sm:$0xff]
    %v149 = vld [vmem:[#allocation2 + $0x224] sm:$0xff]
    %v150 = vld [vmem:[#allocation2 + $0x22c] sm:$0xf]
    %v151 = vld [vmem:[#allocation2 + $0x230] sm:$0xff]
    %v152 = vld [vmem:[#allocation2 + $0x238] sm:$0xff]
    %v153 = vld [vmem:[#allocation2 + $0x240] sm:$0xf]
    %v154 = vld [vmem:[#allocation2 + $0x244] sm:$0xff]
    %v155 = vld [vmem:[#allocation2 + $0x24c] sm:$0xff]
    %v156 = vld [vmem:[#allocation2 + $0x254] sm:$0xf]
    %v157 = vld [vmem:[#allocation2 + $0x258] sm:$0xff]
    %v158 = vld [vmem:[#allocation2 + $0x260] sm:$0xff]
    %v159 = vld [vmem:[#allocation2 + $0x268] sm:$0xf]
    %v160 = vld [vmem:[#allocation2 + $0x26c] sm:$0xff]
    %v161 = vld [vmem:[#allocation2 + $0x274] sm:$0xff]
    %v162 = vld [vmem:[#allocation2 + $0x27c] sm:$0xf]
    %v163 = vld [vmem:[#allocation2 + $0x280] sm:$0xff]
    %v164 = vld [vmem:[#allocation2 + $0x288] sm:$0xff]
    %v165 = vld [vmem:[#allocation2 + $0x290] sm:$0xf]
    %v166 = vld [vmem:[#allocation2 + $0x294] sm:$0xff]
    %v167 = vld [vmem:[#allocation2 + $0x29c] sm:$0xff]
    %v168 = vld [vmem:[#allocation2 + $0x2a4] sm:$0xf]
    %v169 = vld [vmem:[#allocation2 + $0x2a8] sm:$0xff]
    %v170 = vld [vmem:[#allocation2 + $0x2b0] sm:$0xff]
    %v171 = vld [vmem:[#allocation2 + $0x2b8] sm:$0xf]
    %v172 = vld [vmem:[#allocation2 + $0x2bc] sm:$0xff]
    %v173 = vld [vmem:[#allocation2 + $0x2c4] sm:$0xff]
    %v174 = vld [vmem:[#allocation2 + $0x2cc] sm:$0xf]
    %v175 = vld [vmem:[#allocation2 + $0x2d0] sm:$0xff]
    %v176 = vld [vmem:[#allocation2 + $0x2d8] sm:$0xff]
    %v177 = vld [vmem:[#allocation2 + $0x2e0] sm:$0xf]
    %v178 = vld [vmem:[#allocation2 + $0x2e4] sm:$0xff]
    %v179 = vld [vmem:[#allocation2 + $0x2ec] sm:$0xff]
    %v180 = vld [vmem:[#allocation2 + $0x2f4] sm:$0xf]
    %v181 = vld [vmem:[#allocation2 + $0x2f8] sm:$0xff]
    %v182 = vld [vmem:[#allocation2 + $0x300] sm:$0xff]
    %v183 = vld [vmem:[#allocation2 + $0x308] sm:$0xf]
    %v184 = vld [vmem:[#allocation2 + $0x30c] sm:$0xff]
    %v185 = vld [vmem:[#allocation2 + $0x314] sm:$0xff]
    %v186 = vld [vmem:[#allocation2 + $0x31c] sm:$0xf]
    %v307 = vunpack.c.l.b16 %v67
    %v308 = vunpack.c.h.b16 %v67
    %v309 = vunpack.c.l.b16 %v68
    %v310 = vunpack.c.h.b16 %v68
    %v311 = vunpack.c.l.b16 %v69
    %v312 = vunpack.c.l.b16 %v70
    %v313 = vunpack.c.h.b16 %v70
    %v314 = vunpack.c.l.b16 %v71
    %v315 = vunpack.c.h.b16 %v71
    %v316 = vunpack.c.l.b16 %v72
    %v317 = vunpack.c.l.b16 %v73
    %v318 = vunpack.c.h.b16 %v73
    %v319 = vunpack.c.l.b16 %v74
    %v320 = vunpack.c.h.b16 %v74
    %v321 = vunpack.c.l.b16 %v75
    %v322 = vunpack.c.l.b16 %v76
    %v323 = vunpack.c.h.b16 %v76
    %v324 = vunpack.c.l.b16 %v77
    %v325 = vunpack.c.h.b16 %v77
    %v326 = vunpack.c.l.b16 %v78
    %v327 = vunpack.c.l.b16 %v79
    %v328 = vunpack.c.h.b16 %v79
    %v329 = vunpack.c.l.b16 %v80
    %v330 = vunpack.c.h.b16 %v80
    %v331 = vunpack.c.l.b16 %v81
    %v332 = vunpack.c.l.b16 %v82
    %v333 = vunpack.c.h.b16 %v82
    %v334 = vunpack.c.l.b16 %v83
    %v335 = vunpack.c.h.b16 %v83
    %v336 = vunpack.c.l.b16 %v84
    %v337 = vunpack.c.l.b16 %v85
    %v338 = vunpack.c.h.b16 %v85
    %v339 = vunpack.c.l.b16 %v86
    %v340 = vunpack.c.h.b16 %v86
    %v341 = vunpack.c.l.b16 %v87
    %v342 = vunpack.c.l.b16 %v88
    %v343 = vunpack.c.h.b16 %v88
    %v344 = vunpack.c.l.b16 %v89
    %v345 = vunpack.c.h.b16 %v89
    %v346 = vunpack.c.l.b16 %v90
    %v347 = vunpack.c.l.b16 %v91
    %v348 = vunpack.c.h.b16 %v91
    %v349 = vunpack.c.l.b16 %v92
    %v350 = vunpack.c.h.b16 %v92
    %v351 = vunpack.c.l.b16 %v93
    %v352 = vunpack.c.l.b16 %v94
    %v353 = vunpack.c.h.b16 %v94
    %v354 = vunpack.c.l.b16 %v95
    %v355 = vunpack.c.h.b16 %v95
    %v356 = vunpack.c.l.b16 %v96
    %v357 = vunpack.c.l.b16 %v97
    %v358 = vunpack.c.h.b16 %v97
    %v359 = vunpack.c.l.b16 %v98
    %v360 = vunpack.c.h.b16 %v98
    %v361 = vunpack.c.l.b16 %v99
    %v362 = vunpack.c.l.b16 %v100
    %v363 = vunpack.c.h.b16 %v100
    %v364 = vunpack.c.l.b16 %v101
    %v365 = vunpack.c.h.b16 %v101
    %v366 = vunpack.c.l.b16 %v102
    %v367 = vunpack.c.l.b16 %v103
    %v368 = vunpack.c.h.b16 %v103
    %v369 = vunpack.c.l.b16 %v104
    %v370 = vunpack.c.h.b16 %v104
    %v371 = vunpack.c.l.b16 %v105
    %v372 = vunpack.c.l.b16 %v106
    %v373 = vunpack.c.h.b16 %v106
    %v374 = vunpack.c.l.b16 %v107
    %v375 = vunpack.c.h.b16 %v107
    %v376 = vunpack.c.l.b16 %v108
    %v377 = vunpack.c.l.b16 %v109
    %v378 = vunpack.c.h.b16 %v109
    %v379 = vunpack.c.l.b16 %v110
    %v380 = vunpack.c.h.b16 %v110
    %v381 = vunpack.c.l.b16 %v111
    %v382 = vunpack.c.l.b16 %v112
    %v383 = vunpack.c.h.b16 %v112
    %v384 = vunpack.c.l.b16 %v113
    %v385 = vunpack.c.h.b16 %v113
    %v386 = vunpack.c.l.b16 %v114
    %v387 = vunpack.c.l.b16 %v115
    %v388 = vunpack.c.h.b16 %v115
    %v389 = vunpack.c.l.b16 %v116
    %v390 = vunpack.c.h.b16 %v116
    %v391 = vunpack.c.l.b16 %v117
    %v392 = vunpack.c.l.b16 %v118
    %v393 = vunpack.c.h.b16 %v118
    %v394 = vunpack.c.l.b16 %v119
    %v395 = vunpack.c.h.b16 %v119
    %v396 = vunpack.c.l.b16 %v120
    %v397 = vunpack.c.l.b16 %v121
    %v398 = vunpack.c.h.b16 %v121
    %v399 = vunpack.c.l.b16 %v122
    %v400 = vunpack.c.h.b16 %v122
    %v401 = vunpack.c.l.b16 %v123
    %v402 = vunpack.c.l.b16 %v124
    %v403 = vunpack.c.h.b16 %v124
    %v404 = vunpack.c.l.b16 %v125
    %v405 = vunpack.c.h.b16 %v125
    %v406 = vunpack.c.l.b16 %v126
    %v407 = vunpack.c.l.b16 %v127
    %v408 = vunpack.c.h.b16 %v127
    %v409 = vunpack.c.l.b16 %v128
    %v410 = vunpack.c.h.b16 %v128
    %v411 = vunpack.c.l.b16 %v129
    %v412 = vunpack.c.l.b16 %v130
    %v413 = vunpack.c.h.b16 %v130
    %v414 = vunpack.c.l.b16 %v131
    %v415 = vunpack.c.h.b16 %v131
    %v416 = vunpack.c.l.b16 %v132
    %v417 = vunpack.c.l.b16 %v133
    %v418 = vunpack.c.h.b16 %v133
    %v419 = vunpack.c.l.b16 %v134
    %v420 = vunpack.c.h.b16 %v134
    %v421 = vunpack.c.l.b16 %v135
    %v422 = vunpack.c.l.b16 %v136
    %v423 = vunpack.c.h.b16 %v136
    %v424 = vunpack.c.l.b16 %v137
    %v425 = vunpack.c.h.b16 %v137
    %v426 = vunpack.c.l.b16 %v138
    %v427 = vunpack.c.l.b16 %v139
    %v428 = vunpack.c.h.b16 %v139
    %v429 = vunpack.c.l.b16 %v140
    %v430 = vunpack.c.h.b16 %v140
    %v431 = vunpack.c.l.b16 %v141
    %v432 = vunpack.c.l.b16 %v142
    %v433 = vunpack.c.h.b16 %v142
    %v434 = vunpack.c.l.b16 %v143
    %v435 = vunpack.c.h.b16 %v143
    %v436 = vunpack.c.l.b16 %v144
    %v437 = vunpack.c.l.b16 %v145
    %v438 = vunpack.c.h.b16 %v145
    %v439 = vunpack.c.l.b16 %v146
    %v440 = vunpack.c.h.b16 %v146
    %v441 = vunpack.c.l.b16 %v147
    %v442 = vunpack.c.l.b16 %v148
    %v443 = vunpack.c.h.b16 %v148
    %v444 = vunpack.c.l.b16 %v149
    %v445 = vunpack.c.h.b16 %v149
    %v446 = vunpack.c.l.b16 %v150
    %v447 = vunpack.c.l.b16 %v151
    %v448 = vunpack.c.h.b16 %v151
    %v449 = vunpack.c.l.b16 %v152
    %v450 = vunpack.c.h.b16 %v152
    %v451 = vunpack.c.l.b16 %v153
    %v452 = vunpack.c.l.b16 %v154
    %v453 = vunpack.c.h.b16 %v154
    %v454 = vunpack.c.l.b16 %v155
    %v455 = vunpack.c.h.b16 %v155
    %v456 = vunpack.c.l.b16 %v156
    %v457 = vunpack.c.l.b16 %v157
    %v458 = vunpack.c.h.b16 %v157
    %v459 = vunpack.c.l.b16 %v158
    %v460 = vunpack.c.h.b16 %v158
    %v461 = vunpack.c.l.b16 %v159
    %v462 = vunpack.c.l.b16 %v160
    %v463 = vunpack.c.h.b16 %v160
    %v464 = vunpack.c.l.b16 %v161
    %v465 = vunpack.c.h.b16 %v161
    %v466 = vunpack.c.l.b16 %v162
    %v467 = vunpack.c.l.b16 %v163
    %v468 = vunpack.c.h.b16 %v163
    %v469 = vunpack.c.l.b16 %v164
    %v470 = vunpack.c.h.b16 %v164
    %v471 = vunpack.c.l.b16 %v165
    %v472 = vunpack.c.l.b16 %v166
    %v473 = vunpack.c.h.b16 %v166
    %v474 = vunpack.c.l.b16 %v167
    %v475 = vunpack.c.h.b16 %v167
    %v476 = vunpack.c.l.b16 %v168
    %v477 = vunpack.c.l.b16 %v169
    %v478 = vunpack.c.h.b16 %v169
    %v479 = vunpack.c.l.b16 %v170
    %v480 = vunpack.c.h.b16 %v170
    %v481 = vunpack.c.l.b16 %v171
    %v482 = vunpack.c.l.b16 %v172
    %v483 = vunpack.c.h.b16 %v172
    %v484 = vunpack.c.l.b16 %v173
    %v485 = vunpack.c.h.b16 %v173
    %v486 = vunpack.c.l.b16 %v174
    %v487 = vunpack.c.l.b16 %v175
    %v488 = vunpack.c.h.b16 %v175
    %v489 = vunpack.c.l.b16 %v176
    %v490 = vunpack.c.h.b16 %v176
    %v491 = vunpack.c.l.b16 %v177
    %v492 = vunpack.c.l.b16 %v178
    %v493 = vunpack.c.h.b16 %v178
    %v494 = vunpack.c.l.b16 %v179
    %v495 = vunpack.c.h.b16 %v179
    %v496 = vunpack.c.l.b16 %v180
    %v497 = vunpack.c.l.b16 %v181
    %v498 = vunpack.c.h.b16 %v181
    %v499 = vunpack.c.l.b16 %v182
    %v500 = vunpack.c.h.b16 %v182
    %v501 = vunpack.c.l.b16 %v183
    %v502 = vunpack.c.l.b16 %v184
    %v503 = vunpack.c.h.b16 %v184
    %v504 = vunpack.c.l.b16 %v185
    %v505 = vunpack.c.h.b16 %v185
    %v506 = vunpack.c.l.b16 %v186
    %v507 = vpack.c.b16 %v312, %v307
    %v508 = vpack.c.b16 %v313, %v308
    %v509 = vpack.c.b16 %v314, %v309
    %v510 = vpack.c.b16 %v315, %v310
    %v511 = vpack.c.b16 %v316, %v311
    %v512 = vpack.c.b16 %v322, %v317
    %v513 = vpack.c.b16 %v323, %v318
    %v514 = vpack.c.b16 %v324, %v319
    %v515 = vpack.c.b16 %v325, %v320
    %v516 = vpack.c.b16 %v326, %v321
    %v517 = vpack.c.b16 %v332, %v327
    %v518 = vpack.c.b16 %v333, %v328
    %v519 = vpack.c.b16 %v334, %v329
    %v520 = vpack.c.b16 %v335, %v330
    %v521 = vpack.c.b16 %v336, %v331
    %v522 = vpack.c.b16 %v342, %v337
    %v523 = vpack.c.b16 %v343, %v338
    %v524 = vpack.c.b16 %v344, %v339
    %v525 = vpack.c.b16 %v345, %v340
    %v526 = vpack.c.b16 %v346, %v341
    %v527 = vpack.c.b16 %v352, %v347
    %v528 = vpack.c.b16 %v353, %v348
    %v529 = vpack.c.b16 %v354, %v349
    %v530 = vpack.c.b16 %v355, %v350
    %v531 = vpack.c.b16 %v356, %v351
    %v532 = vpack.c.b16 %v362, %v357
    %v533 = vpack.c.b16 %v363, %v358
    %v534 = vpack.c.b16 %v364, %v359
    %v535 = vpack.c.b16 %v365, %v360
    %v536 = vpack.c.b16 %v366, %v361
    %v537 = vpack.c.b16 %v372, %v367
    %v538 = vpack.c.b16 %v373, %v368
    %v539 = vpack.c.b16 %v374, %v369
    %v540 = vpack.c.b16 %v375, %v370
    %v541 = vpack.c.b16 %v376, %v371
    %v542 = vpack.c.b16 %v382, %v377
    %v543 = vpack.c.b16 %v383, %v378
    %v544 = vpack.c.b16 %v384, %v379
    %v545 = vpack.c.b16 %v385, %v380
    %v546 = vpack.c.b16 %v386, %v381
    %v547 = vpack.c.b16 %v392, %v387
    %v548 = vpack.c.b16 %v393, %v388
    %v549 = vpack.c.b16 %v394, %v389
    %v550 = vpack.c.b16 %v395, %v390
    %v551 = vpack.c.b16 %v396, %v391
    %v552 = vpack.c.b16 %v402, %v397
    %v553 = vpack.c.b16 %v403, %v398
    %v554 = vpack.c.b16 %v404, %v399
    %v555 = vpack.c.b16 %v405, %v400
    %v556 = vpack.c.b16 %v406, %v401
    %v557 = vpack.c.b16 %v412, %v407
    %v558 = vpack.c.b16 %v413, %v408
    %v559 = vpack.c.b16 %v414, %v409
    %v560 = vpack.c.b16 %v415, %v410
    %v561 = vpack.c.b16 %v416, %v411
    %v562 = vpack.c.b16 %v422, %v417
    %v563 = vpack.c.b16 %v423, %v418
    %v564 = vpack.c.b16 %v424, %v419
    %v565 = vpack.c.b16 %v425, %v420
    %v566 = vpack.c.b16 %v426, %v421
    %v567 = vpack.c.b16 %v432, %v427
    %v568 = vpack.c.b16 %v433, %v428
    %v569 = vpack.c.b16 %v434, %v429
    %v570 = vpack.c.b16 %v435, %v430
    %v571 = vpack.c.b16 %v436, %v431
    %v572 = vpack.c.b16 %v442, %v437
    %v573 = vpack.c.b16 %v443, %v438
    %v574 = vpack.c.b16 %v444, %v439
    %v575 = vpack.c.b16 %v445, %v440
    %v576 = vpack.c.b16 %v446, %v441
    %v577 = vpack.c.b16 %v452, %v447
    %v578 = vpack.c.b16 %v453, %v448
    %v579 = vpack.c.b16 %v454, %v449
    %v580 = vpack.c.b16 %v455, %v450
    %v581 = vpack.c.b16 %v456, %v451
    %v582 = vpack.c.b16 %v462, %v457
    %v583 = vpack.c.b16 %v463, %v458
    %v584 = vpack.c.b16 %v464, %v459
    %v585 = vpack.c.b16 %v465, %v460
    %v586 = vpack.c.b16 %v466, %v461
    %v587 = vpack.c.b16 %v472, %v467
    %v588 = vpack.c.b16 %v473, %v468
    %v589 = vpack.c.b16 %v474, %v469
    %v590 = vpack.c.b16 %v475, %v470
    %v591 = vpack.c.b16 %v476, %v471
    %v592 = vpack.c.b16 %v482, %v477
    %v593 = vpack.c.b16 %v483, %v478
    %v594 = vpack.c.b16 %v484, %v479
    %v595 = vpack.c.b16 %v485, %v480
    %v596 = vpack.c.b16 %v486, %v481
    %v597 = vpack.c.b16 %v492, %v487
    %v598 = vpack.c.b16 %v493, %v488
    %v599 = vpack.c.b16 %v494, %v489
    %v600 = vpack.c.b16 %v495, %v490
    %v601 = vpack.c.b16 %v496, %v491
    %v602 = vpack.c.b16 %v502, %v497
    %v603 = vpack.c.b16 %v503, %v498
    %v604 = vpack.c.b16 %v504, %v499
    %v605 = vpack.c.b16 %v505, %v500
    %v606 = vpack.c.b16 %v506, %v501
    %vm707 = vcmask 523264
    %v709 = vsel %vm707, %v66, 0
    %711 = vmatpush.bf16.msra.mxu0 %v542
    %712 = vmatpush.bf16.msra.mxu0 %v537
    %713 = vmatpush.bf16.msra.mxu0 %v532
    %714 = vmatpush.bf16.msra.mxu0 %v527
    %715 = vmatpush.bf16.msra.mxu0 %v522
    %716 = vmatpush.bf16.msra.mxu0 %v517
    %717 = vmatpush.bf16.msra.mxu0 %v512
    %718 = vmatpush.bf16.msra.mxu0 %v507
    %719 = vmatmul.bf16.gmra.mxu0 %v64
    %v720 = vpop.f32.mrf.mxu0
    %v721 = vadd.f32 0.0, %v720
    %v722 = vpop.f32.mrf.mxu0
    %723 = vdwg.mxu0
    %724 = vmatpush.bf16.msra.mxu0 %v582
    %725 = vmatpush.bf16.msra.mxu0 %v577
    %726 = vmatpush.bf16.msra.mxu0 %v572
    %727 = vmatpush.bf16.msra.mxu0 %v567
    %728 = vmatpush.bf16.msra.mxu0 %v562
    %729 = vmatpush.bf16.msra.mxu0 %v557
    %730 = vmatpush.bf16.msra.mxu0 %v552
    %731 = vmatpush.bf16.msra.mxu0 %v547
    %732 = vmatmul.bf16.gmra.mxu0 %v65
    %v733 = vpop.f32.mrf.mxu0
    %v734 = vadd.f32 %v721, %v733
    %v735 = vpop.f32.mrf.mxu0
    %736 = vdwg.mxu0
    %737 = vmatpush.bf16.msra.mxu0 0
    %738 = vmatpush.bf16.msra.mxu0 0
    %739 = vmatpush.bf16.msra.mxu0 0
    %740 = vmatpush.bf16.msra.mxu0 0
    %741 = vmatpush.bf16.msra.mxu0 %v602
    %742 = vmatpush.bf16.msra.mxu0 %v597
    %743 = vmatpush.bf16.msra.mxu0 %v592
    %744 = vmatpush.bf16.msra.mxu0 %v587
    %745 = vmatmul.bf16.gmra.mxu0 %v709
    %v746 = vpop.f32.mrf.mxu0
    %v747 = vadd.f32 %v734, %v746
    %v748 = vpop.f32.mrf.mxu0
    %749 = vdwg.mxu0
    %750 = vmatpush.bf16.msra.mxu0 %v543
    %751 = vmatpush.bf16.msra.mxu0 %v538
    %752 = vmatpush.bf16.msra.mxu0 %v533
    %753 = vmatpush.bf16.msra.mxu0 %v528
    %754 = vmatpush.bf16.msra.mxu0 %v523
    %755 = vmatpush.bf16.msra.mxu0 %v518
    %756 = vmatpush.bf16.msra.mxu0 %v513
    %757 = vmatpush.bf16.msra.mxu0 %v508
    %758 = vmatmul.bf16.gmra.mxu0 %v64
    %v759 = vpop.f32.mrf.mxu0
    %v760 = vadd.f32 0.0, %v759
    %v761 = vpop.f32.mrf.mxu0
    %762 = vdwg.mxu0
    %763 = vmatpush.bf16.msra.mxu0 %v583
    %764 = vmatpush.bf16.msra.mxu0 %v578
    %765 = vmatpush.bf16.msra.mxu0 %v573
    %766 = vmatpush.bf16.msra.mxu0 %v568
    %767 = vmatpush.bf16.msra.mxu0 %v563
    %768 = vmatpush.bf16.msra.mxu0 %v558
    %769 = vmatpush.bf16.msra.mxu0 %v553
    %770 = vmatpush.bf16.msra.mxu0 %v548
    %771 = vmatmul.bf16.gmra.mxu0 %v65
    %v772 = vpop.f32.mrf.mxu0
    %v773 = vadd.f32 %v760, %v772
    %v774 = vpop.f32.mrf.mxu0
    %775 = vdwg.mxu0
    %776 = vmatpush.bf16.msra.mxu0 0
    %777 = vmatpush.bf16.msra.mxu0 0
    %778 = vmatpush.bf16.msra.mxu0 0
    %779 = vmatpush.bf16.msra.mxu0 0
    %780 = vmatpush.bf16.msra.mxu0 %v603
    %781 = vmatpush.bf16.msra.mxu0 %v598
    %782 = vmatpush.bf16.msra.mxu0 %v593
    %783 = vmatpush.bf16.msra.mxu0 %v588
    %784 = vmatmul.bf16.gmra.mxu0 %v709
    %v785 = vpop.f32.mrf.mxu0
    %v786 = vadd.f32 %v773, %v785
    %v787 = vpop.f32.mrf.mxu0
    %788 = vdwg.mxu0
    %789 = vmatpush.bf16.msra.mxu0 %v544
    %790 = vmatpush.bf16.msra.mxu0 %v539
    %791 = vmatpush.bf16.msra.mxu0 %v534
    %792 = vmatpush.bf16.msra.mxu0 %v529
    %793 = vmatpush.bf16.msra.mxu0 %v524
    %794 = vmatpush.bf16.msra.mxu0 %v519
    %795 = vmatpush.bf16.msra.mxu0 %v514
    %796 = vmatpush.bf16.msra.mxu0 %v509
    %797 = vmatmul.bf16.gmra.mxu0 %v64
    %v798 = vpop.f32.mrf.mxu0
    %v799 = vadd.f32 0.0, %v798
    %v800 = vpop.f32.mrf.mxu0
    %801 = vdwg.mxu0
    %802 = vmatpush.bf16.msra.mxu0 %v584
    %803 = vmatpush.bf16.msra.mxu0 %v579
    %804 = vmatpush.bf16.msra.mxu0 %v574
    %805 = vmatpush.bf16.msra.mxu0 %v569
    %806 = vmatpush.bf16.msra.mxu0 %v564
    %807 = vmatpush.bf16.msra.mxu0 %v559
    %808 = vmatpush.bf16.msra.mxu0 %v554
    %809 = vmatpush.bf16.msra.mxu0 %v549
    %810 = vmatmul.bf16.gmra.mxu0 %v65
    %v811 = vpop.f32.mrf.mxu0
    %v812 = vadd.f32 %v799, %v811
    %v813 = vpop.f32.mrf.mxu0
    %814 = vdwg.mxu0
    %815 = vmatpush.bf16.msra.mxu0 0
    %816 = vmatpush.bf16.msra.mxu0 0
    %817 = vmatpush.bf16.msra.mxu0 0
    %818 = vmatpush.bf16.msra.mxu0 0
    %819 = vmatpush.bf16.msra.mxu0 %v604
    %820 = vmatpush.bf16.msra.mxu0 %v599
    %821 = vmatpush.bf16.msra.mxu0 %v594
    %822 = vmatpush.bf16.msra.mxu0 %v589
    %823 = vmatmul.bf16.gmra.mxu0 %v709
    %v824 = vpop.f32.mrf.mxu0
    %v825 = vadd.f32 %v812, %v824
    %v826 = vpop.f32.mrf.mxu0
    %827 = vdwg.mxu0
    %828 = vmatpush.bf16.msra.mxu0 %v545
    %829 = vmatpush.bf16.msra.mxu0 %v540
    %830 = vmatpush.bf16.msra.mxu0 %v535
    %831 = vmatpush.bf16.msra.mxu0 %v530
    %832 = vmatpush.bf16.msra.mxu0 %v525
    %833 = vmatpush.bf16.msra.mxu0 %v520
    %834 = vmatpush.bf16.msra.mxu0 %v515
    %835 = vmatpush.bf16.msra.mxu0 %v510
    %836 = vmatmul.bf16.gmra.mxu0 %v64
    %v837 = vpop.f32.mrf.mxu0
    %v838 = vadd.f32 0.0, %v837
    %v839 = vpop.f32.mrf.mxu0
    %840 = vdwg.mxu0
    %841 = vmatpush.bf16.msra.mxu0 %v585
    %842 = vmatpush.bf16.msra.mxu0 %v580
    %843 = vmatpush.bf16.msra.mxu0 %v575
    %844 = vmatpush.bf16.msra.mxu0 %v570
    %845 = vmatpush.bf16.msra.mxu0 %v565
    %846 = vmatpush.bf16.msra.mxu0 %v560
    %847 = vmatpush.bf16.msra.mxu0 %v555
    %848 = vmatpush.bf16.msra.mxu0 %v550
    %849 = vmatmul.bf16.gmra.mxu0 %v65
    %v850 = vpop.f32.mrf.mxu0
    %v851 = vadd.f32 %v838, %v850
    %v852 = vpop.f32.mrf.mxu0
    %853 = vdwg.mxu0
    %854 = vmatpush.bf16.msra.mxu0 0
    %855 = vmatpush.bf16.msra.mxu0 0
    %856 = vmatpush.bf16.msra.mxu0 0
    %857 = vmatpush.bf16.msra.mxu0 0
    %858 = vmatpush.bf16.msra.mxu0 %v605
    %859 = vmatpush.bf16.msra.mxu0 %v600
    %860 = vmatpush.bf16.msra.mxu0 %v595
    %861 = vmatpush.bf16.msra.mxu0 %v590
    %862 = vmatmul.bf16.gmra.mxu0 %v709
    %v863 = vpop.f32.mrf.mxu0
    %v864 = vadd.f32 %v851, %v863
    %v865 = vpop.f32.mrf.mxu0
    %866 = vdwg.mxu0
    %867 = vmatpush.bf16.msra.mxu0 %v546
    %868 = vmatpush.bf16.msra.mxu0 %v541
    %869 = vmatpush.bf16.msra.mxu0 %v536
    %870 = vmatpush.bf16.msra.mxu0 %v531
    %871 = vmatpush.bf16.msra.mxu0 %v526
    %872 = vmatpush.bf16.msra.mxu0 %v521
    %873 = vmatpush.bf16.msra.mxu0 %v516
    %874 = vmatpush.bf16.msra.mxu0 %v511
    %875 = vmatmul.bf16.gmra.mxu0 %v64
    %v876 = vpop.f32.mrf.mxu0
    %v877 = vadd.f32 0.0, %v876
    %v878 = vpop.f32.mrf.mxu0
    %879 = vdwg.mxu0
    %880 = vmatpush.bf16.msra.mxu0 %v586
    %881 = vmatpush.bf16.msra.mxu0 %v581
    %882 = vmatpush.bf16.msra.mxu0 %v576
    %883 = vmatpush.bf16.msra.mxu0 %v571
    %884 = vmatpush.bf16.msra.mxu0 %v566
    %885 = vmatpush.bf16.msra.mxu0 %v561
    %886 = vmatpush.bf16.msra.mxu0 %v556
    %887 = vmatpush.bf16.msra.mxu0 %v551
    %888 = vmatmul.bf16.gmra.mxu0 %v65
    %v889 = vpop.f32.mrf.mxu0
    %v890 = vadd.f32 %v877, %v889
    %v891 = vpop.f32.mrf.mxu0
    %892 = vdwg.mxu0
    %893 = vmatpush.bf16.msra.mxu0 0
    %894 = vmatpush.bf16.msra.mxu0 0
    %895 = vmatpush.bf16.msra.mxu0 0
    %896 = vmatpush.bf16.msra.mxu0 0
    %897 = vmatpush.bf16.msra.mxu0 %v606
    %898 = vmatpush.bf16.msra.mxu0 %v601
    %899 = vmatpush.bf16.msra.mxu0 %v596
    %900 = vmatpush.bf16.msra.mxu0 %v591
    %901 = vmatmul.bf16.gmra.mxu0 %v709
    %v902 = vpop.f32.mrf.mxu0
    %v903 = vadd.f32 %v890, %v902
    %v904 = vpop.f32.mrf.mxu0
    %905 = vdwg.mxu0
    %v908 = vunpack.c.l.b16 %v40
    %v909 = vunpack.c.h.b16 %v40
    %v910 = vunpack.c.l.b16 %v41
    %v911 = vpack.c.b16 %v908, %v908
    %v912 = vpack.c.b16 %v909, %v909
    %v913 = vpack.c.b16 %v910, %v910
    %v917 = vsel %vm707, %v913, 0
    %919 = vmatpush.bf16.msra.mxu0 %v542
    %920 = vmatpush.bf16.msra.mxu0 %v537
    %921 = vmatpush.bf16.msra.mxu0 %v532
    %922 = vmatpush.bf16.msra.mxu0 %v527
    %923 = vmatpush.bf16.msra.mxu0 %v522
    %924 = vmatpush.bf16.msra.mxu0 %v517
    %925 = vmatpush.bf16.msra.mxu0 %v512
    %926 = vmatpush.bf16.msra.mxu0 %v507
    %927 = vmatmul.bf16.gmra.mxu0 %v911
    %v928 = vpop.f32.mrf.mxu0
    %v929 = vadd.f32 %v747, %v928
    %v930 = vpop.f32.mrf.mxu0
    %931 = vdwg.mxu0
    %932 = vmatpush.bf16.msra.mxu0 %v582
    %933 = vmatpush.bf16.msra.mxu0 %v577
    %934 = vmatpush.bf16.msra.mxu0 %v572
    %935 = vmatpush.bf16.msra.mxu0 %v567
    %936 = vmatpush.bf16.msra.mxu0 %v562
    %937 = vmatpush.bf16.msra.mxu0 %v557
    %938 = vmatpush.bf16.msra.mxu0 %v552
    %939 = vmatpush.bf16.msra.mxu0 %v547
    %940 = vmatmul.bf16.gmra.mxu0 %v912
    %v941 = vpop.f32.mrf.mxu0
    %v942 = vadd.f32 %v929, %v941
    %v943 = vpop.f32.mrf.mxu0
    %944 = vdwg.mxu0
    %945 = vmatpush.bf16.msra.mxu0 0
    %946 = vmatpush.bf16.msra.mxu0 0
    %947 = vmatpush.bf16.msra.mxu0 0
    %948 = vmatpush.bf16.msra.mxu0 0
    %949 = vmatpush.bf16.msra.mxu0 %v602
    %950 = vmatpush.bf16.msra.mxu0 %v597
    %951 = vmatpush.bf16.msra.mxu0 %v592
    %952 = vmatpush.bf16.msra.mxu0 %v587
    %953 = vmatmul.bf16.gmra.mxu0 %v917
    %v954 = vpop.f32.mrf.mxu0
    %v955 = vadd.f32 %v942, %v954
    %v956 = vpop.f32.mrf.mxu0
    %957 = vdwg.mxu0
    %958 = vmatpush.bf16.msra.mxu0 %v543
    %959 = vmatpush.bf16.msra.mxu0 %v538
    %960 = vmatpush.bf16.msra.mxu0 %v533
    %961 = vmatpush.bf16.msra.mxu0 %v528
    %962 = vmatpush.bf16.msra.mxu0 %v523
    %963 = vmatpush.bf16.msra.mxu0 %v518
    %964 = vmatpush.bf16.msra.mxu0 %v513
    %965 = vmatpush.bf16.msra.mxu0 %v508
    %966 = vmatmul.bf16.gmra.mxu0 %v911
    %v967 = vpop.f32.mrf.mxu0
    %v968 = vadd.f32 %v786, %v967
    %v969 = vpop.f32.mrf.mxu0
    %970 = vdwg.mxu0
    %971 = vmatpush.bf16.msra.mxu0 %v583
    %972 = vmatpush.bf16.msra.mxu0 %v578
    %973 = vmatpush.bf16.msra.mxu0 %v573
    %974 = vmatpush.bf16.msra.mxu0 %v568
    %975 = vmatpush.bf16.msra.mxu0 %v563
    %976 = vmatpush.bf16.msra.mxu0 %v558
    %977 = vmatpush.bf16.msra.mxu0 %v553
    %978 = vmatpush.bf16.msra.mxu0 %v548
    %979 = vmatmul.bf16.gmra.mxu0 %v912
    %v980 = vpop.f32.mrf.mxu0
    %v981 = vadd.f32 %v968, %v980
    %v982 = vpop.f32.mrf.mxu0
    %983 = vdwg.mxu0
    %984 = vmatpush.bf16.msra.mxu0 0
    %985 = vmatpush.bf16.msra.mxu0 0
    %986 = vmatpush.bf16.msra.mxu0 0
    %987 = vmatpush.bf16.msra.mxu0 0
    %988 = vmatpush.bf16.msra.mxu0 %v603
    %989 = vmatpush.bf16.msra.mxu0 %v598
    %990 = vmatpush.bf16.msra.mxu0 %v593
    %991 = vmatpush.bf16.msra.mxu0 %v588
    %992 = vmatmul.bf16.gmra.mxu0 %v917
    %v993 = vpop.f32.mrf.mxu0
    %v994 = vadd.f32 %v981, %v993
    %v995 = vpop.f32.mrf.mxu0
    %996 = vdwg.mxu0
    %997 = vmatpush.bf16.msra.mxu0 %v544
    %998 = vmatpush.bf16.msra.mxu0 %v539
    %999 = vmatpush.bf16.msra.mxu0 %v534
    %1000 = vmatpush.bf16.msra.mxu0 %v529
    %1001 = vmatpush.bf16.msra.mxu0 %v524
    %1002 = vmatpush.bf16.msra.mxu0 %v519
    %1003 = vmatpush.bf16.msra.mxu0 %v514
    %1004 = vmatpush.bf16.msra.mxu0 %v509
    %1005 = vmatmul.bf16.gmra.mxu0 %v911
    %v1006 = vpop.f32.mrf.mxu0
    %v1007 = vadd.f32 %v825, %v1006
    %v1008 = vpop.f32.mrf.mxu0
    %1009 = vdwg.mxu0
    %1010 = vmatpush.bf16.msra.mxu0 %v584
    %1011 = vmatpush.bf16.msra.mxu0 %v579
    %1012 = vmatpush.bf16.msra.mxu0 %v574
    %1013 = vmatpush.bf16.msra.mxu0 %v569
    %1014 = vmatpush.bf16.msra.mxu0 %v564
    %1015 = vmatpush.bf16.msra.mxu0 %v559
    %1016 = vmatpush.bf16.msra.mxu0 %v554
    %1017 = vmatpush.bf16.msra.mxu0 %v549
    %1018 = vmatmul.bf16.gmra.mxu0 %v912
    %v1019 = vpop.f32.mrf.mxu0
    %v1020 = vadd.f32 %v1007, %v1019
    %v1021 = vpop.f32.mrf.mxu0
    %1022 = vdwg.mxu0
    %1023 = vmatpush.bf16.msra.mxu0 0
    %1024 = vmatpush.bf16.msra.mxu0 0
    %1025 = vmatpush.bf16.msra.mxu0 0
    %1026 = vmatpush.bf16.msra.mxu0 0
    %1027 = vmatpush.bf16.msra.mxu0 %v604
    %1028 = vmatpush.bf16.msra.mxu0 %v599
    %1029 = vmatpush.bf16.msra.mxu0 %v594
    %1030 = vmatpush.bf16.msra.mxu0 %v589
    %1031 = vmatmul.bf16.gmra.mxu0 %v917
    %v1032 = vpop.f32.mrf.mxu0
    %v1033 = vadd.f32 %v1020, %v1032
    %v1034 = vpop.f32.mrf.mxu0
    %1035 = vdwg.mxu0
    %1036 = vmatpush.bf16.msra.mxu0 %v545
    %1037 = vmatpush.bf16.msra.mxu0 %v540
    %1038 = vmatpush.bf16.msra.mxu0 %v535
    %1039 = vmatpush.bf16.msra.mxu0 %v530
    %1040 = vmatpush.bf16.msra.mxu0 %v525
    %1041 = vmatpush.bf16.msra.mxu0 %v520
    %1042 = vmatpush.bf16.msra.mxu0 %v515
    %1043 = vmatpush.bf16.msra.mxu0 %v510
    %1044 = vmatmul.bf16.gmra.mxu0 %v911
    %v1045 = vpop.f32.mrf.mxu0
    %v1046 = vadd.f32 %v864, %v1045
    %v1047 = vpop.f32.mrf.mxu0
    %1048 = vdwg.mxu0
    %1049 = vmatpush.bf16.msra.mxu0 %v585
    %1050 = vmatpush.bf16.msra.mxu0 %v580
    %1051 = vmatpush.bf16.msra.mxu0 %v575
    %1052 = vmatpush.bf16.msra.mxu0 %v570
    %1053 = vmatpush.bf16.msra.mxu0 %v565
    %1054 = vmatpush.bf16.msra.mxu0 %v560
    %1055 = vmatpush.bf16.msra.mxu0 %v555
    %1056 = vmatpush.bf16.msra.mxu0 %v550
    %1057 = vmatmul.bf16.gmra.mxu0 %v912
    %v1058 = vpop.f32.mrf.mxu0
    %v1059 = vadd.f32 %v1046, %v1058
    %v1060 = vpop.f32.mrf.mxu0
    %1061 = vdwg.mxu0
    %1062 = vmatpush.bf16.msra.mxu0 0
    %1063 = vmatpush.bf16.msra.mxu0 0
    %1064 = vmatpush.bf16.msra.mxu0 0
    %1065 = vmatpush.bf16.msra.mxu0 0
    %1066 = vmatpush.bf16.msra.mxu0 %v605
    %1067 = vmatpush.bf16.msra.mxu0 %v600
    %1068 = vmatpush.bf16.msra.mxu0 %v595
    %1069 = vmatpush.bf16.msra.mxu0 %v590
    %1070 = vmatmul.bf16.gmra.mxu0 %v917
    %v1071 = vpop.f32.mrf.mxu0
    %v1072 = vadd.f32 %v1059, %v1071
    %v1073 = vpop.f32.mrf.mxu0
    %1074 = vdwg.mxu0
    %1075 = vmatpush.bf16.msra.mxu0 %v546
    %1076 = vmatpush.bf16.msra.mxu0 %v541
    %1077 = vmatpush.bf16.msra.mxu0 %v536
    %1078 = vmatpush.bf16.msra.mxu0 %v531
    %1079 = vmatpush.bf16.msra.mxu0 %v526
    %1080 = vmatpush.bf16.msra.mxu0 %v521
    %1081 = vmatpush.bf16.msra.mxu0 %v516
    %1082 = vmatpush.bf16.msra.mxu0 %v511
    %1083 = vmatmul.bf16.gmra.mxu0 %v911
    %v1084 = vpop.f32.mrf.mxu0
    %v1085 = vadd.f32 %v903, %v1084
    %v1086 = vpop.f32.mrf.mxu0
    %1087 = vdwg.mxu0
    %1088 = vmatpush.bf16.msra.mxu0 %v586
    %1089 = vmatpush.bf16.msra.mxu0 %v581
    %1090 = vmatpush.bf16.msra.mxu0 %v576
    %1091 = vmatpush.bf16.msra.mxu0 %v571
    %1092 = vmatpush.bf16.msra.mxu0 %v566
    %1093 = vmatpush.bf16.msra.mxu0 %v561
    %1094 = vmatpush.bf16.msra.mxu0 %v556
    %1095 = vmatpush.bf16.msra.mxu0 %v551
    %1096 = vmatmul.bf16.gmra.mxu0 %v912
    %v1097 = vpop.f32.mrf.mxu0
    %v1098 = vadd.f32 %v1085, %v1097
    %v1099 = vpop.f32.mrf.mxu0
    %1100 = vdwg.mxu0
    %1101 = vmatpush.bf16.msra.mxu0 0
    %1102 = vmatpush.bf16.msra.mxu0 0
    %1103 = vmatpush.bf16.msra.mxu0 0
    %1104 = vmatpush.bf16.msra.mxu0 0
    %1105 = vmatpush.bf16.msra.mxu0 %v606
    %1106 = vmatpush.bf16.msra.mxu0 %v601
    %1107 = vmatpush.bf16.msra.mxu0 %v596
    %1108 = vmatpush.bf16.msra.mxu0 %v591
    %1109 = vmatmul.bf16.gmra.mxu0 %v917
    %v1110 = vpop.f32.mrf.mxu0
    %v1111 = vadd.f32 %v1098, %v1110
    %v1112 = vpop.f32.mrf.mxu0
    %1113 = vdwg.mxu0
    %v1114 = vld [vmem:[%s2] sm:$0x1f]
    %v1116 = vperm.slane %v1114, 0
    %v1117 = vperm.slane %v1114, 1
    %v1118 = vperm.slane %v1114, 2
    %v1119 = vperm.slane %v1114, 3
    %v1120 = vperm.slane %v1114, 4
    %v1126 = vmul.f32 %v955, %v1116
    %v1127 = vmul.f32 %v994, %v1117
    %v1128 = vmul.f32 %v1033, %v1118
    %v1129 = vmul.f32 %v1072, %v1119
    %v1130 = vmul.f32 %v1111, %v1120
    %v1135 = vrot.slane %v1127, 6
    %v1136 = vrot.slane %v1128, 4
    %v1137 = vrot.slane %v1129, 2
    %v1138 = vsel %vm50, %v1126, %v1135
    %vm1139 = vcmask 1045508
    %v1140 = vsel %vm1139, %v1136, %v1137
    %v1141 = vsel %vm52, %v1138, %v1140
    %1143 = vst [vmem:[%s3] sm:$0xff] %v1141
    %1144 = vst [vmem:[%s3 + $0x8] sm:$0x3] %v1130
    // Predicated region
    $region18: #{unpool_bodypart_to_mid.1} parent=1 // pred_check
      _
    $region19: #{unpool_bodypart_to_mid.1} parent=1 // pred_check_branch
      %1146 = sbr.rel (0) target = $region21
    $region20: #{unpool_bodypart_to_mid.1} parent=1 // pred_region
      _
    $region21: #{unpool_bodypart_to_mid.1} parent=1 // pred_fallthru
      _
    // Predicated region
    $region22: #{unpool_bodypart_to_mid.1} parent=1 // pred_check
      _
    $region23: #{unpool_bodypart_to_mid.1} parent=1 // pred_check_branch
      %1148 = sbr.rel (0) target = $region25
    $region24: #{unpool_bodypart_to_mid.1} parent=1 // pred_region
      _
    $region25: #{unpool_bodypart_to_mid.1} parent=1 // pred_fallthru
      _
    %1149 = vsyncpa [#allocation3], 1

</llo_original>
